<compile_context>
chip_gen: v5e
topology: v5e:2x2
jax: 0.10.0
libtpu: 0.0.40
codegen_flags: <defaults>
</compile_context>

<pallas_src>
import functools

import jax
import jax.numpy as jnp
from jax.experimental import pallas as pl
from jax.experimental.pallas import tpu as pltpu


def _binary_mask_kernel(x_ref, logits_ref, u_ref, y_ref, m_ref,
                        *, temperature, gamma):
    """One (block_b, D) batch tile. u_ref is (K, block_b, D), logits_ref is (K, D)."""
    K = logits_ref.shape[0]
    eps = jnp.float32(jnp.finfo(jnp.float32).eps)
    inv_t = jnp.float32(1.0 / temperature)
    logit_scale = jnp.float32(1.0 / (gamma * temperature))

    x = x_ref[...]                                             # (TB, D)

    m = None
    # K is small and static -> statically unrolled; all live arrays are 2-D (TB, D)
    # full-vreg tiles, and the K-reduction is a cheap running VPU max.
    for k in range(K):
        logit_row = logits_ref[k:k + 1, :] * logit_scale       # (1, D) = logits/(gamma*T)
        u = jnp.clip(u_ref[k], eps, 1.0 - eps)                 # clamp_probs, (TB, D)
        g = -jnp.log(-jnp.log(u))                              # gumbel noise
        s = logit_row + g * inv_t                              # (logits + g) / temperature
        s = s - jnp.max(s, axis=-1, keepdims=True)             # stable softmax
        e = jnp.exp(s)
        inv_den = pl.reciprocal(jnp.sum(e, axis=-1, keepdims=True), approx=False)
        p = e * inv_den                                        # softmax over features
        m = p if m is None else jnp.maximum(m, p)              # max over num_selections

    m_ref[...] = m
    y_ref[...] = x * m


def binary_mask_forward(x, logits_param, key, *,
                        temperature=10.0, gamma=1.0 / 3.0, block_b=None):
    """Returns (x * m, m), matching BinaryMask.forward."""
    B, D = x.shape
    K, D2 = logits_param.shape
    assert D == D2, "input feature dim must match logits input_size"
    # TODO(synk): general D (not a multiple of 128) needs lane padding *plus* -inf
    # masking of the padded features inside the softmax; not needed for this config.
    assert D % 128 == 0, "feature dim must be a multiple of 128 (lane-dense tiles)"

    if block_b is None:
        block_b = B if B <= 256 else 256
    assert B % block_b == 0 and block_b % 8 == 0, "batch tile must divide B and be 8-aligned"

    # Uniform noise (iid per (k, b, d)); layout (K, B, D) so each k-slice is a
    # contiguous (block_b, D) tile inside the kernel.
    u = jax.random.uniform(key, (K, B, D), dtype=jnp.float32)

    kernel = functools.partial(_binary_mask_kernel,
                               temperature=float(temperature),
                               gamma=float(gamma))

    grid = (B // block_b,)
    f = pl.pallas_call(
        kernel,
        out_shape=(jax.ShapeDtypeStruct((B, D), jnp.float32),
                   jax.ShapeDtypeStruct((B, D), jnp.float32)),
        grid=grid,
        in_specs=[
            pl.BlockSpec((block_b, D), lambda i: (i, 0)),        # x tile
            pl.BlockSpec((K, D), lambda i: (0, 0)),              # logits (resident)
            pl.BlockSpec((K, block_b, D), lambda i: (0, i, 0)),  # noise tile
        ],
        out_specs=(
            pl.BlockSpec((block_b, D), lambda i: (i, 0)),        # y = x * m
            pl.BlockSpec((block_b, D), lambda i: (i, 0)),        # m
        ),
        compiler_params=pltpu.CompilerParams(
            dimension_semantics=("parallel",)),
    )
    return f(x, logits_param, u)


if __name__ == "__main__":
    # Module config: input_size=128, num_selections=4; batch of 16 split into two
    # (8, 128) tiles so the grid / megacore path is exercised.
    B, K, D = 16, 4, 128
    temperature, gamma = 10.0, 1.0 / 3.0

    root = jax.random.PRNGKey(0)
    kx, kp, ku = jax.random.split(root, 3)
    x = jax.random.normal(kx, (B, D), dtype=jnp.float32)
    # nn.Parameter starts at zeros in __init__; use small non-trivial values so the
    # softmax is non-uniform and the mask is non-trivial.
    logits_param = 0.1 * jax.random.normal(kp, (K, D), dtype=jnp.float32)

    y, m = binary_mask_forward(x, logits_param, ku,
                               temperature=temperature, gamma=gamma, block_b=8)
    y, m = jax.block_until_ready((y, m))

    # Pure-JAX reference using the identical noise stream (same key / shape / dtype).
    eps = jnp.finfo(jnp.float32).eps
    u = jax.random.uniform(ku, (K, B, D), dtype=jnp.float32)
    u_c = jnp.clip(u, eps, 1.0 - eps)
    g = -jnp.log(-jnp.log(u_c))
    scores = (logits_param[:, None, :] / gamma + g) / temperature
    p = jax.nn.softmax(scores, axis=-1)
    m_expect = jnp.max(p, axis=0)
    y_expect = x * m_expect

    assert y.shape == (B, D) and m.shape == (B, D)
    assert bool(jnp.all(jnp.isfinite(m))) and bool(jnp.all(jnp.isfinite(y)))
    assert bool(jnp.all(m > 0.0)) and bool(jnp.all(m <= 1.0))
    assert bool(jnp.allclose(y, x * m, rtol=1e-6, atol=1e-6))
    assert bool(jnp.allclose(m, m_expect, rtol=1e-4, atol=1e-6)), "mask mismatch vs reference"
    assert bool(jnp.allclose(y, y_expect, rtol=1e-4, atol=1e-6)), "output mismatch vs reference"

    print("KERNEL_OK")
</pallas_src>

<mosaic_0001>
module attributes {stable_mosaic.version = 11 : i64} {
  func.func @_binary_mask_kernel(%arg0: i32, %arg1: memref<8x128xf32, #tpu.memory_space<vmem>>, %arg2: memref<4x128xf32, #tpu.memory_space<vmem>>, %arg3: memref<4x8x128xf32, #tpu.memory_space<vmem>>, %arg4: memref<8x128xf32, #tpu.memory_space<vmem>>, %arg5: memref<8x128xf32, #tpu.memory_space<vmem>>) attributes {dimension_semantics = [#tpu.dimension_semantics<parallel>], iteration_bounds = array<i64: 2>, scalar_prefetch = 0 : i64, scratch_operands = 0 : i64, tpu.core_type = #tpu.core_type<tc>, window_params = [{transform_indices = @transform_0, window_bounds = array<i64: 8, 128>}, {pipeline_mode = #tpu.pipeline_mode<synchronous>, transform_indices = @transform_1, window_bounds = array<i64: 4, 128>}, {transform_indices = @transform_2, window_bounds = array<i64: 4, 8, 128>}, {transform_indices = @transform_3, window_bounds = array<i64: 8, 128>}, {transform_indices = @transform_4, window_bounds = array<i64: 8, 128>}]} {
    %c0 = arith.constant 0 : index
    %c0_0 = arith.constant 0 : index
    %0 = vector.load %arg1[%c0, %c0_0] : memref<8x128xf32, #tpu.memory_space<vmem>>, vector<8x128xf32>
    %c0_1 = arith.constant 0 : index
    %c0_2 = arith.constant 0 : index
    %1 = vector.load %arg2[%c0_1, %c0_2] : memref<4x128xf32, #tpu.memory_space<vmem>>, vector<1x128xf32>
    %cst = arith.constant 3.000000e-01 : f32
    %2 = vector.broadcast %cst : f32 to vector<1x128xf32>
    %3 = arith.mulf %1, %2 : vector<1x128xf32>
    %c0_3 = arith.constant 0 : index
    %c0_4 = arith.constant 0 : index
    %c0_5 = arith.constant 0 : index
    %4 = vector.load %arg3[%c0_3, %c0_4, %c0_5] : memref<4x8x128xf32, #tpu.memory_space<vmem>>, vector<1x8x128xf32>
    %5 = vector.shape_cast %4 : vector<1x8x128xf32> to vector<8x128xf32>
    %cst_6 = arith.constant 1.000000e+00 : f32
    %cst_7 = arith.constant 1.1920929E-7 : f32
    %6 = arith.subf %cst_6, %cst_7 : f32
    %cst_8 = arith.constant 1.1920929E-7 : f32
    %7 = vector.broadcast %cst_8 : f32 to vector<8x128xf32>
    %8 = arith.maximumf %7, %5 : vector<8x128xf32>
    %9 = vector.broadcast %6 : f32 to vector<8x128xf32>
    %10 = arith.minimumf %9, %8 : vector<8x128xf32>
    %11 = math.log %10 : vector<8x128xf32>
    %cst_9 = arith.constant 0.000000e+00 : f32
    %12 = vector.broadcast %cst_9 : f32 to vector<8x128xf32>
    %13 = arith.subf %12, %11 : vector<8x128xf32>
    %14 = math.log %13 : vector<8x128xf32>
    %cst_10 = arith.constant 0.000000e+00 : f32
    %15 = vector.broadcast %cst_10 : f32 to vector<8x128xf32>
    %16 = arith.subf %15, %14 : vector<8x128xf32>
    %cst_11 = arith.constant 1.000000e-01 : f32
    %17 = vector.broadcast %cst_11 : f32 to vector<8x128xf32>
    %18 = arith.mulf %16, %17 : vector<8x128xf32>
    %19 = vector.broadcast %3 : vector<1x128xf32> to vector<8x128xf32>
    %20 = arith.addf %19, %18 : vector<8x128xf32>
    %cst_12 = arith.constant dense<0xFF800000> : vector<8xf32>
    %21 = vector.multi_reduction <maximumf>, %20, %cst_12 [1] : vector<8x128xf32> to vector<8xf32>
    %22 = vector.shape_cast %21 : vector<8xf32> to vector<8x1xf32>
    %23 = vector.broadcast %22 : vector<8x1xf32> to vector<8x128xf32>
    %24 = arith.subf %20, %23 : vector<8x128xf32>
    %25 = math.exp %24 : vector<8x128xf32>
    %cst_13 = arith.constant dense<0.000000e+00> : vector<8xf32>
    %26 = vector.multi_reduction <add>, %25, %cst_13 [1] : vector<8x128xf32> to vector<8xf32>
    %27 = vector.shape_cast %26 : vector<8xf32> to vector<8x1xf32>
    %28 = tpu.reciprocal %27 : vector<8x1xf32> -> vector<8x1xf32>
    %29 = vector.broadcast %28 : vector<8x1xf32> to vector<8x128xf32>
    %30 = arith.mulf %25, %29 : vector<8x128xf32>
    %c1 = arith.constant 1 : index
    %c0_14 = arith.constant 0 : index
    %31 = vector.load %arg2[%c1, %c0_14] : memref<4x128xf32, #tpu.memory_space<vmem>>, vector<1x128xf32>
    %cst_15 = arith.constant 3.000000e-01 : f32
    %32 = vector.broadcast %cst_15 : f32 to vector<1x128xf32>
    %33 = arith.mulf %31, %32 : vector<1x128xf32>
    %c1_16 = arith.constant 1 : index
    %c0_17 = arith.constant 0 : index
    %c0_18 = arith.constant 0 : index
    %34 = vector.load %arg3[%c1_16, %c0_17, %c0_18] : memref<4x8x128xf32, #tpu.memory_space<vmem>>, vector<1x8x128xf32>
    %35 = vector.shape_cast %34 : vector<1x8x128xf32> to vector<8x128xf32>
    %cst_19 = arith.constant 1.000000e+00 : f32
    %cst_20 = arith.constant 1.1920929E-7 : f32
    %36 = arith.subf %cst_19, %cst_20 : f32
    %cst_21 = arith.constant 1.1920929E-7 : f32
    %37 = vector.broadcast %cst_21 : f32 to vector<8x128xf32>
    %38 = arith.maximumf %37, %35 : vector<8x128xf32>
    %39 = vector.broadcast %36 : f32 to vector<8x128xf32>
    %40 = arith.minimumf %39, %38 : vector<8x128xf32>
    %41 = math.log %40 : vector<8x128xf32>
    %cst_22 = arith.constant 0.000000e+00 : f32
    %42 = vector.broadcast %cst_22 : f32 to vector<8x128xf32>
    %43 = arith.subf %42, %41 : vector<8x128xf32>
    %44 = math.log %43 : vector<8x128xf32>
    %cst_23 = arith.constant 0.000000e+00 : f32
    %45 = vector.broadcast %cst_23 : f32 to vector<8x128xf32>
    %46 = arith.subf %45, %44 : vector<8x128xf32>
    %cst_24 = arith.constant 1.000000e-01 : f32
    %47 = vector.broadcast %cst_24 : f32 to vector<8x128xf32>
    %48 = arith.mulf %46, %47 : vector<8x128xf32>
    %49 = vector.broadcast %33 : vector<1x128xf32> to vector<8x128xf32>
    %50 = arith.addf %49, %48 : vector<8x128xf32>
    %cst_25 = arith.constant dense<0xFF800000> : vector<8xf32>
    %51 = vector.multi_reduction <maximumf>, %50, %cst_25 [1] : vector<8x128xf32> to vector<8xf32>
    %52 = vector.shape_cast %51 : vector<8xf32> to vector<8x1xf32>
    %53 = vector.broadcast %52 : vector<8x1xf32> to vector<8x128xf32>
    %54 = arith.subf %50, %53 : vector<8x128xf32>
    %55 = math.exp %54 : vector<8x128xf32>
    %cst_26 = arith.constant dense<0.000000e+00> : vector<8xf32>
    %56 = vector.multi_reduction <add>, %55, %cst_26 [1] : vector<8x128xf32> to vector<8xf32>
    %57 = vector.shape_cast %56 : vector<8xf32> to vector<8x1xf32>
    %58 = tpu.reciprocal %57 : vector<8x1xf32> -> vector<8x1xf32>
    %59 = vector.broadcast %58 : vector<8x1xf32> to vector<8x128xf32>
    %60 = arith.mulf %55, %59 : vector<8x128xf32>
    %61 = arith.maximumf %30, %60 : vector<8x128xf32>
    %c2 = arith.constant 2 : index
    %c0_27 = arith.constant 0 : index
    %62 = vector.load %arg2[%c2, %c0_27] : memref<4x128xf32, #tpu.memory_space<vmem>>, vector<1x128xf32>
    %cst_28 = arith.constant 3.000000e-01 : f32
    %63 = vector.broadcast %cst_28 : f32 to vector<1x128xf32>
    %64 = arith.mulf %62, %63 : vector<1x128xf32>
    %c2_29 = arith.constant 2 : index
    %c0_30 = arith.constant 0 : index
    %c0_31 = arith.constant 0 : index
    %65 = vector.load %arg3[%c2_29, %c0_30, %c0_31] : memref<4x8x128xf32, #tpu.memory_space<vmem>>, vector<1x8x128xf32>
    %66 = vector.shape_cast %65 : vector<1x8x128xf32> to vector<8x128xf32>
    %cst_32 = arith.constant 1.000000e+00 : f32
    %cst_33 = arith.constant 1.1920929E-7 : f32
    %67 = arith.subf %cst_32, %cst_33 : f32
    %cst_34 = arith.constant 1.1920929E-7 : f32
    %68 = vector.broadcast %cst_34 : f32 to vector<8x128xf32>
    %69 = arith.maximumf %68, %66 : vector<8x128xf32>
    %70 = vector.broadcast %67 : f32 to vector<8x128xf32>
    %71 = arith.minimumf %70, %69 : vector<8x128xf32>
    %72 = math.log %71 : vector<8x128xf32>
    %cst_35 = arith.constant 0.000000e+00 : f32
    %73 = vector.broadcast %cst_35 : f32 to vector<8x128xf32>
    %74 = arith.subf %73, %72 : vector<8x128xf32>
    %75 = math.log %74 : vector<8x128xf32>
    %cst_36 = arith.constant 0.000000e+00 : f32
    %76 = vector.broadcast %cst_36 : f32 to vector<8x128xf32>
    %77 = arith.subf %76, %75 : vector<8x128xf32>
    %cst_37 = arith.constant 1.000000e-01 : f32
    %78 = vector.broadcast %cst_37 : f32 to vector<8x128xf32>
    %79 = arith.mulf %77, %78 : vector<8x128xf32>
    %80 = vector.broadcast %64 : vector<1x128xf32> to vector<8x128xf32>
    %81 = arith.addf %80, %79 : vector<8x128xf32>
    %cst_38 = arith.constant dense<0xFF800000> : vector<8xf32>
    %82 = vector.multi_reduction <maximumf>, %81, %cst_38 [1] : vector<8x128xf32> to vector<8xf32>
    %83 = vector.shape_cast %82 : vector<8xf32> to vector<8x1xf32>
    %84 = vector.broadcast %83 : vector<8x1xf32> to vector<8x128xf32>
    %85 = arith.subf %81, %84 : vector<8x128xf32>
    %86 = math.exp %85 : vector<8x128xf32>
    %cst_39 = arith.constant dense<0.000000e+00> : vector<8xf32>
    %87 = vector.multi_reduction <add>, %86, %cst_39 [1] : vector<8x128xf32> to vector<8xf32>
    %88 = vector.shape_cast %87 : vector<8xf32> to vector<8x1xf32>
    %89 = tpu.reciprocal %88 : vector<8x1xf32> -> vector<8x1xf32>
    %90 = vector.broadcast %89 : vector<8x1xf32> to vector<8x128xf32>
    %91 = arith.mulf %86, %90 : vector<8x128xf32>
    %92 = arith.maximumf %61, %91 : vector<8x128xf32>
    %c3 = arith.constant 3 : index
    %c0_40 = arith.constant 0 : index
    %93 = vector.load %arg2[%c3, %c0_40] : memref<4x128xf32, #tpu.memory_space<vmem>>, vector<1x128xf32>
    %cst_41 = arith.constant 3.000000e-01 : f32
    %94 = vector.broadcast %cst_41 : f32 to vector<1x128xf32>
    %95 = arith.mulf %93, %94 : vector<1x128xf32>
    %c3_42 = arith.constant 3 : index
    %c0_43 = arith.constant 0 : index
    %c0_44 = arith.constant 0 : index
    %96 = vector.load %arg3[%c3_42, %c0_43, %c0_44] : memref<4x8x128xf32, #tpu.memory_space<vmem>>, vector<1x8x128xf32>
    %97 = vector.shape_cast %96 : vector<1x8x128xf32> to vector<8x128xf32>
    %cst_45 = arith.constant 1.000000e+00 : f32
    %cst_46 = arith.constant 1.1920929E-7 : f32
    %98 = arith.subf %cst_45, %cst_46 : f32
    %cst_47 = arith.constant 1.1920929E-7 : f32
    %99 = vector.broadcast %cst_47 : f32 to vector<8x128xf32>
    %100 = arith.maximumf %99, %97 : vector<8x128xf32>
    %101 = vector.broadcast %98 : f32 to vector<8x128xf32>
    %102 = arith.minimumf %101, %100 : vector<8x128xf32>
    %103 = math.log %102 : vector<8x128xf32>
    %cst_48 = arith.constant 0.000000e+00 : f32
    %104 = vector.broadcast %cst_48 : f32 to vector<8x128xf32>
    %105 = arith.subf %104, %103 : vector<8x128xf32>
    %106 = math.log %105 : vector<8x128xf32>
    %cst_49 = arith.constant 0.000000e+00 : f32
    %107 = vector.broadcast %cst_49 : f32 to vector<8x128xf32>
    %108 = arith.subf %107, %106 : vector<8x128xf32>
    %cst_50 = arith.constant 1.000000e-01 : f32
    %109 = vector.broadcast %cst_50 : f32 to vector<8x128xf32>
    %110 = arith.mulf %108, %109 : vector<8x128xf32>
    %111 = vector.broadcast %95 : vector<1x128xf32> to vector<8x128xf32>
    %112 = arith.addf %111, %110 : vector<8x128xf32>
    %cst_51 = arith.constant dense<0xFF800000> : vector<8xf32>
    %113 = vector.multi_reduction <maximumf>, %112, %cst_51 [1] : vector<8x128xf32> to vector<8xf32>
    %114 = vector.shape_cast %113 : vector<8xf32> to vector<8x1xf32>
    %115 = vector.broadcast %114 : vector<8x1xf32> to vector<8x128xf32>
    %116 = arith.subf %112, %115 : vector<8x128xf32>
    %117 = math.exp %116 : vector<8x128xf32>
    %cst_52 = arith.constant dense<0.000000e+00> : vector<8xf32>
    %118 = vector.multi_reduction <add>, %117, %cst_52 [1] : vector<8x128xf32> to vector<8xf32>
    %119 = vector.shape_cast %118 : vector<8xf32> to vector<8x1xf32>
    %120 = tpu.reciprocal %119 : vector<8x1xf32> -> vector<8x1xf32>
    %121 = vector.broadcast %120 : vector<8x1xf32> to vector<8x128xf32>
    %122 = arith.mulf %117, %121 : vector<8x128xf32>
    %123 = arith.maximumf %92, %122 : vector<8x128xf32>
    %c0_53 = arith.constant 0 : index
    %c0_54 = arith.constant 0 : index
    %124 = vector.load %arg5[%c0_53, %c0_54] : memref<8x128xf32, #tpu.memory_space<vmem>>, vector<8x128xf32>
    tpu.vector_store %arg5[%c0_53, %c0_54], %123 {strides = array<i32>} : memref<8x128xf32, #tpu.memory_space<vmem>>, vector<8x128xf32>,
    %125 = arith.mulf %0, %123 : vector<8x128xf32>
    %c0_55 = arith.constant 0 : index
    %c0_56 = arith.constant 0 : index
    %126 = vector.load %arg4[%c0_55, %c0_56] : memref<8x128xf32, #tpu.memory_space<vmem>>, vector<8x128xf32>
    tpu.vector_store %arg4[%c0_55, %c0_56], %125 {strides = array<i32>} : memref<8x128xf32, #tpu.memory_space<vmem>>, vector<8x128xf32>,
    return
  }
  func.func @transform_0(%arg0: i32) -> (i32, i32) {
    %c0_i32 = arith.constant 0 : i32
    %c0_i32_0 = arith.constant 0 : i32
    return %arg0, %c0_i32 : i32, i32
  }
  func.func @transform_1(%arg0: i32) -> (i32, i32) {
    %c0_i32 = arith.constant 0 : i32
    %c0_i32_0 = arith.constant 0 : i32
    %c0_i32_1 = arith.constant 0 : i32
    return %c0_i32, %c0_i32_0 : i32, i32
  }
  func.func @transform_2(%arg0: i32) -> (i32, i32, i32) {
    %c0_i32 = arith.constant 0 : i32
    %c0_i32_0 = arith.constant 0 : i32
    %c0_i32_1 = arith.constant 0 : i32
    return %c0_i32, %arg0, %c0_i32_0 : i32, i32, i32
  }
  func.func @transform_3(%arg0: i32) -> (i32, i32) {
    %c0_i32 = arith.constant 0 : i32
    %c0_i32_0 = arith.constant 0 : i32
    return %arg0, %c0_i32 : i32, i32
  }
  func.func @transform_4(%arg0: i32) -> (i32, i32) {
    %c0_i32 = arith.constant 0 : i32
    %c0_i32_0 = arith.constant 0 : i32
    return %arg0, %c0_i32 : i32, i32
  }
}

</mosaic_0001>

<llo_original>
// kernel: tpu_custom_call.1
$region0: #{tpu_custom_call.1}
  #allocation0 [shape = 'u32[]', space=smem, size = 0x4, offset = 0x4, fixed_abs, tag = 'smem constant byte address 0x4 - core index']
  #allocation1 [shape = 'u32[72,128]{1,0:T(1,128)}', space=vmem, size = 0x9000, scoped, tag = 'internal scratch']
  %s0 = inlined_call_operand.hbm [shape: f32[16,128], index: 0, kind: input, shape index: {}]
  %s1 = inlined_call_operand.hbm [shape: f32[4,128], index: 1, kind: input, shape index: {}]
  %s2 = inlined_call_operand.hbm [shape: f32[4,16,128], index: 2, kind: input, shape index: {}]
  %s3 = inlined_call_operand.hbm [shape: f32[16,128], index: 3, kind: output, shape index: {0}]
  %s4 = inlined_call_operand.hbm [shape: f32[16,128], index: 4, kind: output, shape index: {1}]
  %5 = xla_tuple %s3, %s4
  %s6 = sld [smem:[#allocation0]]
  $region65: #{tpu_custom_call.1} parent=0
    _
  %s8 = ssub.s32 1, %s6
  %s9 = scalar_select 0, %s8, %s6
  $region1: #{tpu_custom_call.1} parent=0
    #allocation2 [shape = 'u8[8192]{0}', space=vmem, size = 0x2000, scoped, tag = 'input window, operand 0']
    #allocation3 [shape = 's32[2]{0}', space=sflag, size = 0x8, scoped, tag = 'scoped memory for tpu_custom_call.1']
    #allocation4 [shape = 's32[2]{0}', space=sflag, size = 0x8, scoped, tag = 'scoped memory for tpu_custom_call.1']
    #allocation5 [shape = 'u8[2048]{0}', space=vmem, size = 0x800, scoped, tag = 'input window, operand 1, single buffered']
    #allocation6 [shape = 's32[1]{0}', space=sflag, size = 0x4, scoped, tag = 'scoped memory for tpu_custom_call.1']
    #allocation7 [shape = 'u8[32768]{0}', space=vmem, size = 0x8000, scoped, tag = 'input window, operand 2']
    #allocation8 [shape = 'u8[8192]{0}', space=vmem, size = 0x2000, scoped, tag = 'output window, operand 0']
    #allocation9 [shape = 'u8[8192]{0}', space=vmem, size = 0x2000, scoped, tag = 'output window, operand 1']
    #allocation10 [shape = 's32[2]{0}', space=sflag, size = 0x8, scoped, tag = 'scoped memory for tpu_custom_call.1']
    %10 = vsyncpa [#allocation3], 0
    %s11 = scalar_lea.sflag [#allocation3], 1
    %12 = vsyncpa %s11, 0
    %13 = vsyncpa [#allocation6], 0
    %14 = vsyncpa [#allocation4], 0
    %s15 = scalar_lea.sflag [#allocation4], 1
    %16 = vsyncpa %s15, 0
    %17 = vsyncpa [#allocation10], 0
    %s18 = scalar_lea.sflag [#allocation10], 1
    %19 = vsyncpa %s18, 0
    loop: start=0, step=1, limit=4
    $region2: #{tpu_custom_call.1} parent=1 // loop_pre_header
      _
    $region3: #{tpu_custom_call.1} parent=1 // loop_header
      %s21 = sphi 0, %s25
      %p22 = scmp.ge.s32.totalorder %s21, 4
      %s31 = sphi 0, %s33
      %s34 = sphi 0, %s31
      %s35 = sphi 0, %s34
      %s51 = sphi 0, %s35
      %s55 = sphi 0, %s55
      %s57 = sphi 0, %s55
      %s58 = sphi 0, %s57
      %s72 = sphi 0, %s58
      %s78 = sphi 0, %s80
      %s81 = sphi 0, %s78
      %s82 = sphi 0, %s81
      %s98 = sphi 0, %s82
      %s104 = sphi 0, %s106
      %s107 = sphi 0, %s104
      %s108 = sphi 0, %s107
      %s124 = sphi 0, %s108
      %s130 = sphi 0, %s132
      %s133 = sphi 0, %s130
      %s134 = sphi 0, %s133
      %s150 = sphi 0, %s134
    $region4: #{tpu_custom_call.1} parent=1 // loop_header_branch
      %24 = sbr.rel (%p22) target = $region8
    $region5: #{tpu_custom_call.1} parent=1 // loop_body
      %s26 = ssub.s32 %s21, 1
      %s27 = ssub.s32 %s21, 2
      %s28 = sadd.s32 %s21, 1
      %s29 = ssub.s32 %s21, %s28
      %p30 = scmp.eq.s32.totalorder %s29, 0
      %s32 = sadd.s32 %s31, 1
      %s33 = scalar_select %p30, %s31, %s32
      %p36 = pneg %p30
      %p37 = scmp.eq.s32.totalorder %s21, 1
      %p38 = por %p36, %p37
      %p39 = scmp.ne.s32.totalorder %s31, %s34
      %p40 = scmp.eq.s32.totalorder %s21, 0
      %p41 = por %p39, %p40
      %p42 = scmp.ne.s32.totalorder %s31, %s34
      %p43 = scmp.eq.s32.totalorder %s26, 1
      %p44 = por %p42, %p43
      %p45 = scmp.ne.s32.totalorder %s34, %s35
      %p46 = scmp.eq.s32.totalorder %s26, 0
      %p47 = por %p45, %p46
      %p48 = scmp.ne.s32.totalorder %s34, %s35
      %p49 = scmp.eq.s32.totalorder %s27, 1
      %p50 = por %p48, %p49
      %p52 = scmp.ne.s32.totalorder %s35, %s51
      %p53 = scmp.eq.s32.totalorder %s27, 0
      %p54 = por %p52, %p53
      %s56 = sadd.s32 %s55, 1
      %p59 = scmp.eq.s32.totalorder %s21, 1
      %p60 = scmp.ne.s32.totalorder %s55, %s57
      %p61 = scmp.eq.s32.totalorder %s21, 0
      %p62 = por %p60, %p61
      %p63 = scmp.ne.s32.totalorder %s55, %s57
      %p64 = scmp.eq.s32.totalorder %s26, 1
      %p65 = por %p63, %p64
      %p66 = scmp.ne.s32.totalorder %s57, %s58
      %p67 = scmp.eq.s32.totalorder %s26, 0
      %p68 = por %p66, %p67
      %p69 = scmp.ne.s32.totalorder %s57, %s58
      %p70 = scmp.eq.s32.totalorder %s27, 1
      %p71 = por %p69, %p70
      %p73 = scmp.ne.s32.totalorder %s58, %s72
      %p74 = scmp.eq.s32.totalorder %s27, 0
      %p75 = por %p73, %p74
      %s76 = ssub.s32 %s21, %s28
      %p77 = scmp.eq.s32.totalorder %s76, 0
      %s79 = sadd.s32 %s78, 1
      %s80 = scalar_select %p77, %s78, %s79
      %p83 = pneg %p77
      %p84 = scmp.eq.s32.totalorder %s21, 1
      %p85 = por %p83, %p84
      %p86 = scmp.ne.s32.totalorder %s78, %s81
      %p87 = scmp.eq.s32.totalorder %s21, 0
      %p88 = por %p86, %p87
      %p89 = scmp.ne.s32.totalorder %s78, %s81
      %p90 = scmp.eq.s32.totalorder %s26, 1
      %p91 = por %p89, %p90
      %p92 = scmp.ne.s32.totalorder %s81, %s82
      %p93 = scmp.eq.s32.totalorder %s26, 0
      %p94 = por %p92, %p93
      %p95 = scmp.ne.s32.totalorder %s81, %s82
      %p96 = scmp.eq.s32.totalorder %s27, 1
      %p97 = por %p95, %p96
      %p99 = scmp.ne.s32.totalorder %s82, %s98
      %p100 = scmp.eq.s32.totalorder %s27, 0
      %p101 = por %p99, %p100
      %s102 = ssub.s32 %s21, %s28
      %p103 = scmp.eq.s32.totalorder %s102, 0
      %s105 = sadd.s32 %s104, 1
      %s106 = scalar_select %p103, %s104, %s105
      %p109 = pneg %p103
      %p110 = scmp.eq.s32.totalorder %s21, 1
      %p111 = por %p109, %p110
      %p112 = scmp.ne.s32.totalorder %s104, %s107
      %p113 = scmp.eq.s32.totalorder %s21, 0
      %p114 = por %p112, %p113
      %p115 = scmp.ne.s32.totalorder %s104, %s107
      %p116 = scmp.eq.s32.totalorder %s26, 1
      %p117 = por %p115, %p116
      %p118 = scmp.ne.s32.totalorder %s107, %s108
      %p119 = scmp.eq.s32.totalorder %s26, 0
      %p120 = por %p118, %p119
      %p121 = scmp.ne.s32.totalorder %s107, %s108
      %p122 = scmp.eq.s32.totalorder %s27, 1
      %p123 = por %p121, %p122
      %p125 = scmp.ne.s32.totalorder %s108, %s124
      %p126 = scmp.eq.s32.totalorder %s27, 0
      %p127 = por %p125, %p126
      %s128 = ssub.s32 %s21, %s28
      %p129 = scmp.eq.s32.totalorder %s128, 0
      %s131 = sadd.s32 %s130, 1
      %s132 = scalar_select %p129, %s130, %s131
      %p135 = pneg %p129
      %p136 = scmp.eq.s32.totalorder %s21, 1
      %p137 = por %p135, %p136
      %p138 = scmp.ne.s32.totalorder %s130, %s133
      %p139 = scmp.eq.s32.totalorder %s21, 0
      %p140 = por %p138, %p139
      %p141 = scmp.ne.s32.totalorder %s130, %s133
      %p142 = scmp.eq.s32.totalorder %s26, 1
      %p143 = por %p141, %p142
      %p144 = scmp.ne.s32.totalorder %s133, %s134
      %p145 = scmp.eq.s32.totalorder %s26, 0
      %p146 = por %p144, %p145
      %p147 = scmp.ne.s32.totalorder %s133, %s134
      %p148 = scmp.eq.s32.totalorder %s27, 1
      %p149 = por %p147, %p148
      %p151 = scmp.ne.s32.totalorder %s134, %s150
      %p152 = scmp.eq.s32.totalorder %s27, 0
      %p153 = por %p151, %p152
      %p154 = scmp.le.s32.totalorder 1, %s21
      %p155 = scmp.lt.s32.totalorder %s21, 3
      %p156 = pnand %p154, %p155
      %p157 = pneg %p156
      // Predicated region
      $region9: #{tpu_custom_call.1} parent=5 // pred_check
        _
      $region10: #{tpu_custom_call.1} parent=5 // pred_check_branch
        %159 = sbr.rel (%p156) target = $region12
      $region11: #{tpu_custom_call.1} parent=5 // pred_region
        %s160 = ssub.s32 %s21, 1
        // Predicated region
        $region13: #{tpu_custom_call.1} parent=11 // pred_check
          %p161 = pneg %p68
        $region14: #{tpu_custom_call.1} parent=11 // pred_check_branch
          %163 = sbr.rel (%p161) target = $region16
        $region15: #{tpu_custom_call.1} parent=11 // pred_region
          %165 = vsyncadd [#allocation6], 0
          %s167 = sshll.u32 %s1, 4
          %s168 = int_to_ptr.hbm [resolvable:$true] %s167
          %s169 = sshll.u32 [#allocation5], 4
          %s170 = int_to_ptr.vmem [resolvable:$true] %s169
          %172 = dma.hbm_to_vmem [thread:$0]  %s168, 64, %s170, [#allocation6]
        $region16: #{tpu_custom_call.1} parent=11 // pred_fallthru
          _
      $region12: #{tpu_custom_call.1} parent=5 // pred_fallthru
        _
      %p173 = scmp.lt.s32.totalorder %s21, 2
      // Predicated region
      $region17: #{tpu_custom_call.1} parent=5 // pred_check
        %p174 = pneg %p173
      $region18: #{tpu_custom_call.1} parent=5 // pred_check_branch
        %176 = sbr.rel (%p174) target = $region20
      $region19: #{tpu_custom_call.1} parent=5 // pred_region
        // Predicated region
        $region21: #{tpu_custom_call.1} parent=19 // pred_check
          %p177 = pneg %p41
        $region22: #{tpu_custom_call.1} parent=19 // pred_check_branch
          %179 = sbr.rel (%p177) target = $region24
        $region23: #{tpu_custom_call.1} parent=19 // pred_region
          %s180 = sand.u32 %s21, 1
          %s181 = scalar_lea.sflag [#allocation3], %s180
          %s182 = sand.u32 %s31, 1
          %s183 = smul.addr %s182, 8
          %s184 = scalar_lea.vmem [#allocation2], %s183
          %186 = vsyncadd %s181, 0
          %s187 = smul.addr %s21, 8
          %s188 = scalar_lea.hbm %s0, %s187
          %s190 = sshll.u32 %s188, 4
          %s191 = int_to_ptr.hbm [resolvable:$true] %s190
          %s192 = sshll.u32 %s184, 4
          %s193 = int_to_ptr.vmem [resolvable:$true] %s192
          %195 = dma.hbm_to_vmem [thread:$0]  %s191, 128, %s193, %s181
        $region24: #{tpu_custom_call.1} parent=19 // pred_fallthru
          _
        // Predicated region
        $region25: #{tpu_custom_call.1} parent=19 // pred_check
          %p196 = pneg %p88
        $region26: #{tpu_custom_call.1} parent=19 // pred_check_branch
          %198 = sbr.rel (%p196) target = $region28
        $region27: #{tpu_custom_call.1} parent=19 // pred_region
          %s199 = sand.u32 %s21, 1
          %s200 = scalar_lea.sflag [#allocation3], %s199
          %s201 = sand.u32 %s78, 1
          %s202 = smul.addr %s201, 32
          %s203 = scalar_lea.vmem [#allocation7], %s202
          %205 = vsyncadd %s200, 0
          %s206 = smul.addr %s21, 8
          %s207 = scalar_lea.hbm %s2, %s206
          %s208 = sshll.u32 %s207, 4
          %s209 = int_to_ptr.hbm [resolvable:$true] %s208
          %s210 = sshll.u32 %s203, 4
          %s211 = int_to_ptr.vmem [resolvable:$true] %s210
          %216 = dma.hbm_to_vmem [thread:$0]  %s209, 512, %s211, %s200, 256, 128, 8
        $region28: #{tpu_custom_call.1} parent=19 // pred_fallthru
          _
      $region20: #{tpu_custom_call.1} parent=5 // pred_fallthru
        _
      %p217 = scmp.le.s32.totalorder 1, %s21
      %p218 = scmp.lt.s32.totalorder %s21, 3
      %p219 = pnand %p217, %p218
      %p220 = pneg %p219
      // Predicated region
      $region29: #{tpu_custom_call.1} parent=5 // pred_check
        _
      $region30: #{tpu_custom_call.1} parent=5 // pred_check_branch
        %222 = sbr.rel (%p219) target = $region32
      $region31: #{tpu_custom_call.1} parent=5 // pred_region
        %s223 = ssub.s32 %s21, 1
        %s224 = sand.u32 %s26, 1
        %s225 = scalar_lea.sflag [#allocation3], %s224
        %s226 = sand.u32 %s34, 1
        %s227 = smul.addr %s226, 8
        %s228 = scalar_lea.vmem [#allocation2], %s227
        // Predicated region
        $region33: #{tpu_custom_call.1} parent=31 // pred_check
          %p229 = pneg %p47
        $region34: #{tpu_custom_call.1} parent=31 // pred_check_branch
          %231 = sbr.rel (%p229) target = $region36
        $region35: #{tpu_custom_call.1} parent=31 // pred_region
          %233 = dma.done %s225, 128
        $region36: #{tpu_custom_call.1} parent=31 // pred_fallthru
          _
        // Predicated region
        $region37: #{tpu_custom_call.1} parent=31 // pred_check
          %p234 = pneg %p68
        $region38: #{tpu_custom_call.1} parent=31 // pred_check_branch
          %236 = sbr.rel (%p234) target = $region40
        $region39: #{tpu_custom_call.1} parent=31 // pred_region
          %238 = dma.done [#allocation6], 64
        $region40: #{tpu_custom_call.1} parent=31 // pred_fallthru
          _
        %s239 = sand.u32 %s26, 1
        %s240 = scalar_lea.sflag [#allocation3], %s239
        %s241 = sand.u32 %s81, 1
        %s242 = smul.addr %s241, 32
        %s243 = scalar_lea.vmem [#allocation7], %s242
        // Predicated region
        $region41: #{tpu_custom_call.1} parent=31 // pred_check
          %p244 = pneg %p94
        $region42: #{tpu_custom_call.1} parent=31 // pred_check_branch
          %246 = sbr.rel (%p244) target = $region44
        $region43: #{tpu_custom_call.1} parent=31 // pred_region
          %248 = dma.done %s240, 512
        $region44: #{tpu_custom_call.1} parent=31 // pred_fallthru
          _
        %s249 = sand.u32 %s26, 1
        %s250 = scalar_lea.sflag [#allocation3], %s249
        %s251 = sand.u32 %s34, 1
        %s252 = smul.addr %s251, 8
        %s253 = scalar_lea.vmem [#allocation2], %s252
        %p254 = pneg %p47
        %p255 = pneg %p44
        %p256 = pneg %p68
        %p257 = pneg %p65
        %s258 = sand.u32 %s26, 1
        %s259 = scalar_lea.sflag [#allocation3], %s258
        %s260 = sand.u32 %s81, 1
        %s261 = smul.addr %s260, 32
        %s262 = scalar_lea.vmem [#allocation7], %s261
        %p263 = pneg %p94
        %p264 = pneg %p91
        %p265 = pneg %p120
        %p266 = pneg %p117
        %s267 = sand.u32 %s107, 1
        %s268 = scalar_lea.sflag [#allocation4], %s267
        %s269 = sand.u32 %s107, 1
        %s270 = smul.addr %s269, 8
        %s271 = scalar_lea.vmem [#allocation8], %s270
        %p272 = pneg %p146
        %p273 = pneg %p143
        %s274 = sand.u32 %s133, 1
        %s275 = scalar_lea.sflag [#allocation10], %s274
        %s276 = sand.u32 %s133, 1
        %s277 = smul.addr %s276, 8
        %s278 = scalar_lea.vmem [#allocation9], %s277
        %v279 = vld [vmem:[%s228] sm:$0xff]
        %v280 = vld [vmem:[#allocation5] sm:$0x1]
        %v281 = vmul.f32 %v280, 0.3
        %v282 = vld [vmem:[%s243] sm:$0xff]
        %v283 = vmax.f32 %v282, 1.1920929e-07
        %v284 = vmin.f32 %v283, 0.9999999
        %v285 = vlog2.pop %v284
        %v286 = vmul.f32 %v285, 0.6931472
        %v287 = vsub.f32 0.0, %v286
        %v288 = vlog2.pop %v287
        %v289 = vmul.f32 %v288, 0.6931472
        %v290 = vsub.f32 0.0, %v289
        %v291 = vmul.f32 %v290, 0.1
        %v292 = vperm.slane %v281, 0
        %v293 = vadd.f32 %v292, %v291
        %294 = vmax.xlane.f32.xlu0 %v293
        %v295 = vpop.xlane.xlu0 %294
        %v296 = vsub.f32 %v293, %v295
        %v297 = vmul.f32 %v296, 1.442695
        %v298 = vpow.pop %v297
        %299 = vadd.xlane.f32.xlu0 %v298
        %v300 = vpop.xlane.xlu0 %299
        %v301 = vrcp.pop %v300
        %v302 = vmul.f32 %v300, %v301
        %v303 = vsub.f32 1.0, %v302
        %v304 = vmul.f32 %v301, %v303
        %v305 = vadd.f32 %v301, %v304
        %vm306 = vweird.f32 %v300
        %vm307 = vweird.f32 %v301
        %vm308 = vmor %vm306, %vm307
        %v309 = vsel %vm308, %v301, %v305
        %v310 = vand.u32 2147483647, %v300
        %vm311 = vcmp.eq.f32.partialorder %v310, 8.507059e+37
        %v312 = vand.u32 %v300, 2147483648
        %v313 = vor.u32 1.1754944e-38, %v312
        %v314 = vsel %vm311, %v313, %v309
        %v315 = vmul.f32 %v298, %v314
        %v316 = vld [vmem:[#allocation5 + $0x1] sm:$0x1]
        %v317 = vmul.f32 %v316, 0.3
        %s318 = scalar_lea.vmem %s243, 8 [#allocation7]
        %v319 = vld [vmem:[%s318] sm:$0xff]
        %v320 = vmax.f32 %v319, 1.1920929e-07
        %v321 = vmin.f32 %v320, 0.9999999
        %v322 = vlog2.pop %v321
        %v323 = vmul.f32 %v322, 0.6931472
        %v324 = vsub.f32 0.0, %v323
        %v325 = vlog2.pop %v324
        %v326 = vmul.f32 %v325, 0.6931472
        %v327 = vsub.f32 0.0, %v326
        %v328 = vmul.f32 %v327, 0.1
        %v329 = vperm.slane %v317, 0
        %v330 = vadd.f32 %v329, %v328
        %331 = vmax.xlane.f32.xlu0 %v330
        %v332 = vpop.xlane.xlu0 %331
        %v333 = vsub.f32 %v330, %v332
        %v334 = vmul.f32 %v333, 1.442695
        %v335 = vpow.pop %v334
        %336 = vadd.xlane.f32.xlu0 %v335
        %v337 = vpop.xlane.xlu0 %336
        %v338 = vrcp.pop %v337
        %v339 = vmul.f32 %v337, %v338
        %v340 = vsub.f32 1.0, %v339
        %v341 = vmul.f32 %v338, %v340
        %v342 = vadd.f32 %v338, %v341
        %vm343 = vweird.f32 %v337
        %vm344 = vweird.f32 %v338
        %vm345 = vmor %vm343, %vm344
        %v346 = vsel %vm345, %v338, %v342
        %v347 = vand.u32 2147483647, %v337
        %vm348 = vcmp.eq.f32.partialorder %v347, 8.507059e+37
        %v349 = vand.u32 %v337, 2147483648
        %v350 = vor.u32 1.1754944e-38, %v349
        %v351 = vsel %vm348, %v350, %v346
        %v352 = vmul.f32 %v335, %v351
        %v353 = vmax.f32 %v315, %v352
        %v354 = vld [vmem:[#allocation5 + $0x2] sm:$0x1]
        %v355 = vmul.f32 %v354, 0.3
        %s356 = scalar_lea.vmem %s243, 16 [#allocation7]
        %v357 = vld [vmem:[%s356] sm:$0xff]
        %v358 = vmax.f32 %v357, 1.1920929e-07
        %v359 = vmin.f32 %v358, 0.9999999
        %v360 = vlog2.pop %v359
        %v361 = vmul.f32 %v360, 0.6931472
        %v362 = vsub.f32 0.0, %v361
        %v363 = vlog2.pop %v362
        %v364 = vmul.f32 %v363, 0.6931472
        %v365 = vsub.f32 0.0, %v364
        %v366 = vmul.f32 %v365, 0.1
        %v367 = vperm.slane %v355, 0
        %v368 = vadd.f32 %v367, %v366
        %369 = vmax.xlane.f32.xlu0 %v368
        %v370 = vpop.xlane.xlu0 %369
        %v371 = vsub.f32 %v368, %v370
        %v372 = vmul.f32 %v371, 1.442695
        %v373 = vpow.pop %v372
        %374 = vadd.xlane.f32.xlu0 %v373
        %v375 = vpop.xlane.xlu0 %374
        %v376 = vrcp.pop %v375
        %v377 = vmul.f32 %v375, %v376
        %v378 = vsub.f32 1.0, %v377
        %v379 = vmul.f32 %v376, %v378
        %v380 = vadd.f32 %v376, %v379
        %vm381 = vweird.f32 %v375
        %vm382 = vweird.f32 %v376
        %vm383 = vmor %vm381, %vm382
        %v384 = vsel %vm383, %v376, %v380
        %v385 = vand.u32 2147483647, %v375
        %vm386 = vcmp.eq.f32.partialorder %v385, 8.507059e+37
        %v387 = vand.u32 %v375, 2147483648
        %v388 = vor.u32 1.1754944e-38, %v387
        %v389 = vsel %vm386, %v388, %v384
        %v390 = vmul.f32 %v373, %v389
        %v391 = vmax.f32 %v353, %v390
        %v392 = vld [vmem:[#allocation5 + $0x3] sm:$0x1]
        %v393 = vmul.f32 %v392, 0.3
        %s394 = scalar_lea.vmem %s243, 24 [#allocation7]
        %v395 = vld [vmem:[%s394] sm:$0xff]
        %v396 = vmax.f32 %v395, 1.1920929e-07
        %v397 = vmin.f32 %v396, 0.9999999
        %v398 = vlog2.pop %v397
        %v399 = vmul.f32 %v398, 0.6931472
        %v400 = vsub.f32 0.0, %v399
        %v401 = vlog2.pop %v400
        %v402 = vmul.f32 %v401, 0.6931472
        %v403 = vsub.f32 0.0, %v402
        %v404 = vmul.f32 %v403, 0.1
        %v405 = vperm.slane %v393, 0
        %v406 = vadd.f32 %v405, %v404
        %407 = vmax.xlane.f32.xlu0 %v406
        %v408 = vpop.xlane.xlu0 %407
        %v409 = vsub.f32 %v406, %v408
        %v410 = vmul.f32 %v409, 1.442695
        %v411 = vpow.pop %v410
        %412 = vadd.xlane.f32.xlu0 %v411
        %v413 = vpop.xlane.xlu0 %412
        %v414 = vrcp.pop %v413
        %v415 = vmul.f32 %v413, %v414
        %v416 = vsub.f32 1.0, %v415
        %v417 = vmul.f32 %v414, %v416
        %v418 = vadd.f32 %v414, %v417
        %vm419 = vweird.f32 %v413
        %vm420 = vweird.f32 %v414
        %vm421 = vmor %vm419, %vm420
        %v422 = vsel %vm421, %v414, %v418
        %v423 = vand.u32 2147483647, %v413
        %vm424 = vcmp.eq.f32.partialorder %v423, 8.507059e+37
        %v425 = vand.u32 %v413, 2147483648
        %v426 = vor.u32 1.1754944e-38, %v425
        %v427 = vsel %vm424, %v426, %v422
        %v428 = vmul.f32 %v411, %v427
        %v429 = vmax.f32 %v391, %v428
        %430 = vst [vmem:[%s278] sm:$0xff] %v429
        %v431 = vmul.f32 %v279, %v429
        %432 = vst [vmem:[%s271] sm:$0xff] %v431
        %s433 = sand.u32 %s107, 1
        %s434 = scalar_lea.sflag [#allocation4], %s433
        %s435 = sand.u32 %s107, 1
        %s436 = smul.addr %s435, 8
        %s437 = scalar_lea.vmem [#allocation8], %s436
        %s438 = sand.u32 %s133, 1
        %s439 = scalar_lea.sflag [#allocation10], %s438
        %s440 = sand.u32 %s133, 1
        %s441 = smul.addr %s440, 8
        %s442 = scalar_lea.vmem [#allocation9], %s441
        // Predicated region
        $region45: #{tpu_custom_call.1} parent=31 // pred_check
          %p443 = pneg %p117
        $region46: #{tpu_custom_call.1} parent=31 // pred_check_branch
          %445 = sbr.rel (%p443) target = $region48
        $region47: #{tpu_custom_call.1} parent=31 // pred_region
          %447 = vsyncadd %s434, 0
          %s448 = smul.addr %s26, 8
          %s449 = scalar_lea.hbm %s3, %s448
          %s451 = sshll.u32 %s437, 4
          %s452 = int_to_ptr.vmem [resolvable:$true] %s451
          %s453 = sshll.u32 %s449, 4
          %s454 = int_to_ptr.hbm [resolvable:$true] %s453
          %456 = dma.vmem_to_hbm [thread:$0]  %s452, 128, %s454, %s434
        $region48: #{tpu_custom_call.1} parent=31 // pred_fallthru
          _
        // Predicated region
        $region49: #{tpu_custom_call.1} parent=31 // pred_check
          %p457 = pneg %p143
        $region50: #{tpu_custom_call.1} parent=31 // pred_check_branch
          %459 = sbr.rel (%p457) target = $region52
        $region51: #{tpu_custom_call.1} parent=31 // pred_region
          %461 = vsyncadd %s439, 0
          %s462 = smul.addr %s26, 8
          %s463 = scalar_lea.hbm %s4, %s462
          %s465 = sshll.u32 %s442, 4
          %s466 = int_to_ptr.vmem [resolvable:$true] %s465
          %s467 = sshll.u32 %s463, 4
          %s468 = int_to_ptr.hbm [resolvable:$true] %s467
          %470 = dma.vmem_to_hbm [thread:$0]  %s466, 128, %s468, %s439
        $region52: #{tpu_custom_call.1} parent=31 // pred_fallthru
          _
      $region32: #{tpu_custom_call.1} parent=5 // pred_fallthru
        _
      %p471 = scmp.le.s32.totalorder 2, %s21
      // Predicated region
      $region53: #{tpu_custom_call.1} parent=5 // pred_check
        %p472 = pneg %p471
      $region54: #{tpu_custom_call.1} parent=5 // pred_check_branch
        %474 = sbr.rel (%p472) target = $region56
      $region55: #{tpu_custom_call.1} parent=5 // pred_region
        %s475 = ssub.s32 %s21, 2
        // Predicated region
        $region57: #{tpu_custom_call.1} parent=55 // pred_check
          %p476 = pneg %p123
        $region58: #{tpu_custom_call.1} parent=55 // pred_check_branch
          %478 = sbr.rel (%p476) target = $region60
        $region59: #{tpu_custom_call.1} parent=55 // pred_region
          %s479 = sand.u32 %s108, 1
          %s480 = scalar_lea.sflag [#allocation4], %s479
          %s481 = sand.u32 %s108, 1
          %s482 = smul.addr %s481, 8
          %s483 = scalar_lea.vmem [#allocation8], %s482
          %485 = dma.done %s480, 128
        $region60: #{tpu_custom_call.1} parent=55 // pred_fallthru
          _
        // Predicated region
        $region61: #{tpu_custom_call.1} parent=55 // pred_check
          %p486 = pneg %p149
        $region62: #{tpu_custom_call.1} parent=55 // pred_check_branch
          %488 = sbr.rel (%p486) target = $region64
        $region63: #{tpu_custom_call.1} parent=55 // pred_region
          %s489 = sand.u32 %s134, 1
          %s490 = scalar_lea.sflag [#allocation10], %s489
          %s491 = sand.u32 %s134, 1
          %s492 = smul.addr %s491, 8
          %s493 = scalar_lea.vmem [#allocation9], %s492
          %495 = dma.done %s490, 128
        $region64: #{tpu_custom_call.1} parent=55 // pred_fallthru
          _
      $region56: #{tpu_custom_call.1} parent=5 // pred_fallthru
        _
    $region6: #{tpu_custom_call.1} parent=1 // loop_footer
      %s25 = sadd.s32 1, %s21
    $region7: #{tpu_custom_call.1} parent=1 // loop_footer_branch
      %20 = sbr.rel target = $region3
    $region8: #{tpu_custom_call.1} parent=1 // loop_exit
      _
    %496 = vsyncpa [#allocation3], 1
    %s497 = scalar_lea.sflag [#allocation3], 1
    %498 = vsyncpa %s497, 1
    %499 = vsyncpa [#allocation6], 1
    %500 = vsyncpa [#allocation4], 1
    %s501 = scalar_lea.sflag [#allocation4], 1
    %502 = vsyncpa %s501, 1
    %503 = vsyncpa [#allocation10], 1
    %s504 = scalar_lea.sflag [#allocation10], 1
    %505 = vsyncpa %s504, 1

</llo_original>
